<compile_context>
chip_gen: v7x
topology: tpu7x:2x2x1
jax: 0.10.0
libtpu: 0.0.40
codegen_flags: <defaults>
</compile_context>

<pallas_src>
import functools

import jax
import jax.numpy as jnp
from jax.experimental import pallas as pl
from jax.experimental.pallas import tpu as pltpu

_LANE = 128
_SUBLANE = 8


def _round_up(x, m):
    return (x + m - 1) // m * m


def _pick_packing(d_in, d_out):
    """Pad features to the smallest divisor of 128 (or a multiple of 128)."""
    d_eff = max(d_in, d_out)
    if d_eff <= _LANE:
        d_pad = d_eff
        while _LANE % d_pad:
            d_pad += 1
        return d_pad, _LANE // d_pad
    return _round_up(d_eff, _LANE), 1


def _pick_tile_rows(lane_width, dtype_bytes, sub, requested=None):
    """Row tile sized from the generation-aware VMEM budget."""
    try:
        vmem_cap = int(pltpu.get_tpu_info().vmem_capacity_bytes)
    except Exception:  # CPU tracing / older API: assume the smallest (v7x) VMEM
        vmem_cap = 64 << 20
    if vmem_cap >= (128 << 20):          # v5e / v6e: 128 MiB VMEM
        budget, tm_cap = 64 << 20, 8192
    else:                                # v7x: 64 MiB VMEM per TensorCore
        budget, tm_cap = 26 << 20, 4096
    # 2x double-buffered in/out tiles + ~5 tile-sized f32 temporaries.
    per_row = lane_width * (4 * dtype_bytes + 5 * 4)
    tm = (budget // per_row) // sub * sub
    tm = max(sub, min(tm, tm_cap))
    if requested:
        tm = max(sub, min(tm, _round_up(requested, sub)))
    return tm, vmem_cap


def _fc_scores(x_ref, w_ref, s_ref, b_ref):
    """Per-lane fc logits + sigmoid for one lane-dense tile.

    x_ref: (tm, L) input tile; w_ref: (1, L) fc weight tiled `pack` times;
    s_ref: (L, L) block-diagonal 0/1 selector; b_ref: (1,) fc bias in SMEM.
    One DEFAULT-precision MXU matmul both group-sums the fc dot product and
    broadcasts the per-row logit back to every lane of its group; the extra
    sigmoids land on the otherwise-idle EUP slot.
    """
    xf = x_ref[...].astype(jnp.float32)
    xw = xf * w_ref[...]                                    # VPU, exact f32
    logits = jnp.dot(xw, s_ref[...],
                     precision=jax.lax.Precision.DEFAULT,   # 1-pass bf16 MXU
                     preferred_element_type=jnp.float32) + b_ref[0]
    return xf, jax.nn.sigmoid(logits)                       # (tm, L)


def _weighted_kernel(x_ref, w_ref, s_ref, b_ref, o_ref):
    xf, scores = _fc_scores(x_ref, w_ref, s_ref, b_ref)
    o_ref[...] = (xf * scores).astype(o_ref.dtype)          # embedded * scores


def _concat_kernel(x_ref, w_ref, s_ref, m_ref, b_ref, o_ref):
    xf, scores = _fc_scores(x_ref, w_ref, s_ref, b_ref)
    # torch.cat([embedded, scores], dim=3): lane `D` of each packed row carries
    # the score (blend with the hoisted 0/1 mask; padded input lanes are zero).
    o_ref[...] = (xf + m_ref[...] * (scores - xf)).astype(o_ref.dtype)


def attention_scoring(embedded, w, b, *, scoring="sigmoid",
                      attention_type="weighted", tile_rows=None):
    """Pallas implementation of AttentionScoring.forward.

    embedded: (B, S1, S2, D) float; D == fc input dim.
    w:        (D,) fc weight (out_features = 1)
    b:        ()   fc bias
    """
    if scoring != "sigmoid":
        # TODO(synk): legacy nn.Softmax() (implicit dim -> dim=1 on 4D input) is
        # a cross-row reduction over S1; not implemented in this kernel.
        raise NotImplementedError("only scoring='sigmoid' is implemented")

    B, S1, S2, D = embedded.shape
    concat = attention_type != "weighted"
    d_out = D + 1 if concat else D
    d_pad, pack = _pick_packing(D, d_out)
    L = d_pad * pack                                   # multiple of 128
    N = B * S1 * S2
    M = pl.cdiv(N, pack)                               # packed (lane-dense) rows

    dt = embedded.dtype
    dt_bytes = jnp.dtype(dt).itemsize
    sub = max(_SUBLANE, _SUBLANE * 4 // dt_bytes)      # 8 for f32, 16 for bf16
    tm, vmem_cap = _pick_tile_rows(L, dt_bytes, sub, requested=tile_rows)
    tm = min(tm, _round_up(M, sub))
    grid = pl.cdiv(M, tm)
    if M > sub:
        # Prefer an even number of balanced grid steps so the 1-D "parallel"
        # axis splits evenly across the two v7x TensorCores (neutral elsewhere).
        grid = max(grid, 2)
        grid += grid % 2
        tm = max(sub, _round_up(pl.cdiv(M, grid), sub))
        grid = pl.cdiv(M, tm)

    # Layout plumbing. Fast path (weighted, D == 32, N % pack == 0): pure
    # reshape views, no extra HBM traffic. A padding copy only happens when the
    # features need zero-fill (concat) or the row count is ragged; the grid's
    # partial last block handles M % tm via masked stores, never a host pad.
    x2d = embedded.reshape(N, D)
    pad_feat = d_pad - D
    pad_rows = M * pack - N
    if pad_feat or pad_rows:
        x2d = jnp.pad(x2d, ((0, pad_rows), (0, pad_feat)))
    x_packed = x2d.reshape(M, L)

    lane = jnp.arange(L, dtype=jnp.int32)
    group = lane // d_pad
    s_mat = (group[:, None] == group[None, :]).astype(jnp.float32)   # (L, L)
    w_pad = jnp.zeros((d_pad,), jnp.float32).at[:D].set(w.astype(jnp.float32))
    w_tiled = jnp.tile(w_pad, pack).reshape(1, L)
    b_smem = jnp.asarray(b, jnp.float32).reshape(1)

    x_spec = pl.BlockSpec((tm, L), lambda i: (i, 0))
    const_row = pl.BlockSpec((1, L), lambda i: (0, 0))
    const_mat = pl.BlockSpec((L, L), lambda i: (0, 0))
    smem_spec = pl.BlockSpec(memory_space=pltpu.MemorySpace.SMEM)

    if concat:
        score_mask = ((lane % d_pad) == D).astype(jnp.float32).reshape(1, L)
        kernel = _concat_kernel
        inputs = (x_packed, w_tiled, s_mat, score_mask, b_smem)
        in_specs = [x_spec, const_row, const_mat, const_row, smem_spec]
    else:
        kernel = _weighted_kernel
        inputs = (x_packed, w_tiled, s_mat, b_smem)
        in_specs = [x_spec, const_row, const_mat, smem_spec]

    # Generous scoped-VMEM limit on 128-MiB parts; capped headroom on v7x.
    vmem_limit = (64 << 20) if vmem_cap >= (128 << 20) else (36 << 20)

    out_packed = pl.pallas_call(
        kernel,
        out_shape=jax.ShapeDtypeStruct((M, L), dt),
        grid_spec=pltpu.PrefetchScalarGridSpec(
            num_scalar_prefetch=0,
            grid=(grid,),
            in_specs=in_specs,
            out_specs=pl.BlockSpec((tm, L), lambda i: (i, 0)),
        ),
        compiler_params=pltpu.CompilerParams(
            dimension_semantics=("parallel",),
            vmem_limit_bytes=vmem_limit,
        ),
    )(*inputs)

    if pad_rows == 0 and d_out == d_pad:
        return out_packed.reshape(B, S1, S2, d_out)    # pure view, no copy
    out2d = out_packed.reshape(M * pack, d_pad)[:N, :d_out]
    return out2d.reshape(B, S1, S2, d_out)


def _reference(embedded, w, b, attention_type):
    linear = jnp.einsum("bijd,d->bij", embedded, w,
                        precision=jax.lax.Precision.HIGHEST)[..., None] + b
    scores = jax.nn.sigmoid(linear)
    if attention_type == "weighted":
        return embedded * scores
    return jnp.concatenate([embedded, scores], axis=3)


if __name__ == "__main__":
    key = jax.random.PRNGKey(0)
    # The fc matmul runs one bf16 MXU pass (only the exact-f32 x*w operand is
    # rounded, ~2^-9 relative); worst-case score error is a few 1e-4.
    ATOL, RTOL = 2e-3, 5e-3

    # ---- Case 1: attention_type='weighted', scoring='sigmoid', D=32 --------
    word_dim = 32
    k_x, k_w, k_b, key = jax.random.split(key, 4)
    embedded = jax.random.normal(k_x, (2, 4, 8, word_dim), dtype=jnp.float32)
    bound = 1.0 / jnp.sqrt(word_dim)               # nn.Linear default init range
    w = jax.random.uniform(k_w, (word_dim,), jnp.float32, -bound, bound)
    b = jax.random.uniform(k_b, (), jnp.float32, -bound, bound)

    out_w = attention_scoring(embedded, w, b, scoring="sigmoid",
                              attention_type="weighted")
    jax.block_until_ready(out_w)
    assert out_w.shape == (2, 4, 8, word_dim)
    assert jnp.allclose(out_w, _reference(embedded, w, b, "weighted"),
                        atol=ATOL, rtol=RTOL)

    # ---- Case 2: attention_type='concat' (module uses word_dim - 1 = 31) ---
    d_in = word_dim - 1
    k_x2, k_w2, k_b2, key = jax.random.split(key, 4)
    embedded2 = jax.random.normal(k_x2, (2, 4, 8, d_in), dtype=jnp.float32)
    bound2 = 1.0 / jnp.sqrt(d_in)
    w2 = jax.random.uniform(k_w2, (d_in,), jnp.float32, -bound2, bound2)
    b2 = jax.random.uniform(k_b2, (), jnp.float32, -bound2, bound2)

    out_c = attention_scoring(embedded2, w2, b2, scoring="sigmoid",
                              attention_type="concat")
    jax.block_until_ready(out_c)
    assert out_c.shape == (2, 4, 8, word_dim)
    assert jnp.allclose(out_c, _reference(embedded2, w2, b2, "concat"),
                        atol=ATOL, rtol=RTOL)

    # ---- Case 3: ragged row count (N % pack != 0 -> row padding path) ------
    k_x3, key = jax.random.split(key, 2)
    embedded3 = jax.random.normal(k_x3, (1, 3, 5, word_dim), dtype=jnp.float32)
    out_r = attention_scoring(embedded3, w, b, scoring="sigmoid",
                              attention_type="weighted")
    jax.block_until_ready(out_r)
    assert out_r.shape == (1, 3, 5, word_dim)
    assert jnp.allclose(out_r, _reference(embedded3, w, b, "weighted"),
                        atol=ATOL, rtol=RTOL)

    # ---- Case 4: multi-tile grid (even 2-way split, partial-free fast path) -
    k_x4, key = jax.random.split(key, 2)
    embedded4 = jax.random.normal(k_x4, (4, 16, 32, word_dim), dtype=jnp.float32)
    out_m = attention_scoring(embedded4, w, b, scoring="sigmoid",
                              attention_type="weighted")
    jax.block_until_ready(out_m)
    assert out_m.shape == (4, 16, 32, word_dim)
    assert jnp.allclose(out_m, _reference(embedded4, w, b, "weighted"),
                        atol=ATOL, rtol=RTOL)

    print("KERNEL_OK")
</pallas_src>

<mosaic_0001>
module attributes {stable_mosaic.version = 11 : i64} {
  func.func @_weighted_kernel(%arg0: i32, %arg1: memref<8x128xf32, #tpu.memory_space<vmem>>, %arg2: memref<1x128xf32, #tpu.memory_space<vmem>>, %arg3: memref<128x128xf32, #tpu.memory_space<vmem>>, %arg4: memref<1xf32, #tpu.memory_space<smem>>, %arg5: memref<8x128xf32, #tpu.memory_space<vmem>>) attributes {dimension_semantics = [#tpu.dimension_semantics<parallel>], iteration_bounds = array<i64: 2>, scalar_prefetch = 0 : i64, scratch_operands = 0 : i64, tpu.core_type = #tpu.core_type<tc>, window_params = [{transform_indices = @transform_0, window_bounds = array<i64: 8, 128>}, {pipeline_mode = #tpu.pipeline_mode<synchronous>, transform_indices = @transform_1, window_bounds = array<i64: 1, 128>}, {pipeline_mode = #tpu.pipeline_mode<synchronous>, transform_indices = @transform_2, window_bounds = array<i64: 128, 128>}, {transform_indices = @transform_3, window_bounds = array<i64: 1>}, {transform_indices = @transform_4, window_bounds = array<i64: 8, 128>}]} {
    %c0 = arith.constant 0 : index
    %c0_0 = arith.constant 0 : index
    %0 = vector.load %arg1[%c0, %c0_0] : memref<8x128xf32, #tpu.memory_space<vmem>>, vector<8x128xf32>
    %c0_1 = arith.constant 0 : index
    %c0_2 = arith.constant 0 : index
    %1 = vector.load %arg2[%c0_1, %c0_2] : memref<1x128xf32, #tpu.memory_space<vmem>>, vector<1x128xf32>
    %2 = vector.broadcast %1 : vector<1x128xf32> to vector<8x128xf32>
    %3 = arith.mulf %0, %2 : vector<8x128xf32>
    %c0_3 = arith.constant 0 : index
    %c0_4 = arith.constant 0 : index
    %4 = vector.load %arg3[%c0_3, %c0_4] : memref<128x128xf32, #tpu.memory_space<vmem>>, vector<128x128xf32>
    %cst = arith.constant dense<0.000000e+00> : vector<8x128xf32>
    %5 = tpu.matmul %3, %4, %cst {dimension_numbers = #tpu.dot_dimension_numbers<[1], [0], [0], [1], [0, 0, 1, 1], [], []>} : vector<8x128xf32>, vector<128x128xf32>, vector<8x128xf32> -> vector<8x128xf32>
    %c0_5 = arith.constant 0 : index
    %6 = memref.load %arg4[%c0_5] : memref<1xf32, #tpu.memory_space<smem>>
    %7 = vector.broadcast %6 : f32 to vector<8x128xf32>
    %8 = arith.addf %5, %7 : vector<8x128xf32>
    %9 = arith.negf %8 : vector<8x128xf32>
    %10 = math.exp %9 : vector<8x128xf32>
    %cst_6 = arith.constant 1.000000e+00 : f32
    %11 = vector.broadcast %cst_6 : f32 to vector<8x128xf32>
    %12 = arith.addf %11, %10 : vector<8x128xf32>
    %13 = arith.divf %11, %12 : vector<8x128xf32>
    %14 = arith.mulf %0, %13 : vector<8x128xf32>
    %c0_7 = arith.constant 0 : index
    %c0_8 = arith.constant 0 : index
    %15 = vector.load %arg5[%c0_7, %c0_8] : memref<8x128xf32, #tpu.memory_space<vmem>>, vector<8x128xf32>
    tpu.vector_store %arg5[%c0_7, %c0_8], %14 {strides = array<i32>} : memref<8x128xf32, #tpu.memory_space<vmem>>, vector<8x128xf32>,
    return
  }
  func.func @transform_0(%arg0: i32) -> (i32, i32) {
    %c0_i32 = arith.constant 0 : i32
    %c0_i32_0 = arith.constant 0 : i32
    return %arg0, %c0_i32 : i32, i32
  }
  func.func @transform_1(%arg0: i32) -> (i32, i32) {
    %c0_i32 = arith.constant 0 : i32
    %c0_i32_0 = arith.constant 0 : i32
    %c0_i32_1 = arith.constant 0 : i32
    return %c0_i32, %c0_i32_0 : i32, i32
  }
  func.func @transform_2(%arg0: i32) -> (i32, i32) {
    %c0_i32 = arith.constant 0 : i32
    %c0_i32_0 = arith.constant 0 : i32
    %c0_i32_1 = arith.constant 0 : i32
    return %c0_i32, %c0_i32_0 : i32, i32
  }
  func.func @transform_3(%arg0: i32) -> i32 {
    %c0_i32 = arith.constant 0 : i32
    %c0_i32_0 = arith.constant 0 : i32
    return %c0_i32 : i32
  }
  func.func @transform_4(%arg0: i32) -> (i32, i32) {
    %c0_i32 = arith.constant 0 : i32
    %c0_i32_0 = arith.constant 0 : i32
    return %arg0, %c0_i32 : i32, i32
  }
}

</mosaic_0001>

<llo_original>
// kernel: tpu_custom_call.1
$region0: #{tpu_custom_call.1}
  #allocation0 [shape = 'u32[]', space=smem, size = 0x4, offset = 0x4, fixed_abs, tag = 'smem constant byte address 0x4 - core index']
  #allocation1 [shape = 'u32[144,128]{1,0:T(1,128)}', space=vmem, size = 0x12000, scoped, tag = 'internal scratch']
  #allocation2 [shape = 'f32[1]{0:T(128)S(6)}', space=smem, size = 0x200, scoped, tag = 'scoped memory for tpu_custom_call.1']
  %s0 = inlined_call_operand.hbm [shape: f32[16,128], index: 0, kind: input, shape index: {}]
  %s1 = inlined_call_operand.vmem [shape: f32[1,128], index: 1, kind: input, shape index: {}]
  %s2 = inlined_call_operand.hbm [shape: f32[128,128], index: 2, kind: input, shape index: {}]
  %s3 = inlined_call_operand.<no memory space> [shape: f32[1], index: 3, kind: input, shape index: {}]
  %s4 = inlined_call_operand.hbm [shape: f32[16,128], index: 4, kind: output, shape index: {}]
  %s5 = sld [smem:[#allocation0]]
  $region57: #{tpu_custom_call.1} parent=0
    _
  %s7 = ssub.s32 1, %s5
  %s8 = scalar_select 0, %s7, %s5
  %9 = sst [smem:[#allocation2]] %s3
  $region1: #{tpu_custom_call.1} parent=0
    #allocation3 [shape = 'u8[8192]{0}', space=vmem, size = 0x2000, scoped, tag = 'input window, operand 0']
    #allocation4 [shape = 's32[2]{0}', space=sflag, size = 0x8, scoped, tag = 'scoped memory for tpu_custom_call.1']
    #allocation5 [shape = 's32[2]{0}', space=sflag, size = 0x8, scoped, tag = 'scoped memory for tpu_custom_call.1']
    #allocation6 [shape = 'u8[65536]{0}', space=vmem, size = 0x10000, scoped, tag = 'input window, operand 2, single buffered']
    #allocation7 [shape = 's32[1]{0}', space=sflag, size = 0x4, scoped, tag = 'scoped memory for tpu_custom_call.1']
    #allocation8 [shape = 'u8[8192]{0}', space=vmem, size = 0x2000, scoped, tag = 'output window, operand 0']
    %10 = vsyncpa [#allocation4], 0
    %s11 = scalar_lea.sflag [#allocation4], 1
    %12 = vsyncpa %s11, 0
    %13 = vsyncpa [#allocation7], 0
    %14 = vsyncpa [#allocation5], 0
    %s15 = scalar_lea.sflag [#allocation5], 1
    %16 = vsyncpa %s15, 0
    loop: start=0, step=1, limit=4
    $region2: #{tpu_custom_call.1} parent=1 // loop_pre_header
      _
    $region3: #{tpu_custom_call.1} parent=1 // loop_header
      %s18 = sphi 0, %s22
      %p19 = scmp.ge.s32.totalorder %s18, 4
      %s28 = sphi 0, %s30
      %s31 = sphi 0, %s28
      %s32 = sphi 0, %s31
      %s48 = sphi 0, %s32
      %s52 = sphi 0, %s52
      %s54 = sphi 0, %s52
      %s55 = sphi 0, %s54
      %s69 = sphi 0, %s55
      %s73 = sphi 0, %s73
      %s75 = sphi 0, %s73
      %s76 = sphi 0, %s75
      %s90 = sphi 0, %s76
      %s94 = sphi 0, %s94
      %s96 = sphi 0, %s94
      %s97 = sphi 0, %s96
      %s111 = sphi 0, %s97
      %s117 = sphi 0, %s119
      %s120 = sphi 0, %s117
      %s121 = sphi 0, %s120
      %s137 = sphi 0, %s121
    $region4: #{tpu_custom_call.1} parent=1 // loop_header_branch
      %21 = sbr.rel (%p19) target = $region8
    $region5: #{tpu_custom_call.1} parent=1 // loop_body
      %s23 = ssub.s32 %s18, 1
      %s24 = ssub.s32 %s18, 2
      %s25 = sadd.s32 %s18, 1
      %s26 = ssub.s32 %s18, %s25
      %p27 = scmp.eq.s32.totalorder %s26, 0
      %s29 = sadd.s32 %s28, 1
      %s30 = scalar_select %p27, %s28, %s29
      %p33 = pneg %p27
      %p34 = scmp.eq.s32.totalorder %s18, 1
      %p35 = por %p33, %p34
      %p36 = scmp.ne.s32.totalorder %s28, %s31
      %p37 = scmp.eq.s32.totalorder %s18, 0
      %p38 = por %p36, %p37
      %p39 = scmp.ne.s32.totalorder %s28, %s31
      %p40 = scmp.eq.s32.totalorder %s23, 1
      %p41 = por %p39, %p40
      %p42 = scmp.ne.s32.totalorder %s31, %s32
      %p43 = scmp.eq.s32.totalorder %s23, 0
      %p44 = por %p42, %p43
      %p45 = scmp.ne.s32.totalorder %s31, %s32
      %p46 = scmp.eq.s32.totalorder %s24, 1
      %p47 = por %p45, %p46
      %p49 = scmp.ne.s32.totalorder %s32, %s48
      %p50 = scmp.eq.s32.totalorder %s24, 0
      %p51 = por %p49, %p50
      %s53 = sadd.s32 %s52, 1
      %p56 = scmp.eq.s32.totalorder %s18, 1
      %p57 = scmp.ne.s32.totalorder %s52, %s54
      %p58 = scmp.eq.s32.totalorder %s18, 0
      %p59 = por %p57, %p58
      %p60 = scmp.ne.s32.totalorder %s52, %s54
      %p61 = scmp.eq.s32.totalorder %s23, 1
      %p62 = por %p60, %p61
      %p63 = scmp.ne.s32.totalorder %s54, %s55
      %p64 = scmp.eq.s32.totalorder %s23, 0
      %p65 = por %p63, %p64
      %p66 = scmp.ne.s32.totalorder %s54, %s55
      %p67 = scmp.eq.s32.totalorder %s24, 1
      %p68 = por %p66, %p67
      %p70 = scmp.ne.s32.totalorder %s55, %s69
      %p71 = scmp.eq.s32.totalorder %s24, 0
      %p72 = por %p70, %p71
      %s74 = sadd.s32 %s73, 1
      %p77 = scmp.eq.s32.totalorder %s18, 1
      %p78 = scmp.ne.s32.totalorder %s73, %s75
      %p79 = scmp.eq.s32.totalorder %s18, 0
      %p80 = por %p78, %p79
      %p81 = scmp.ne.s32.totalorder %s73, %s75
      %p82 = scmp.eq.s32.totalorder %s23, 1
      %p83 = por %p81, %p82
      %p84 = scmp.ne.s32.totalorder %s75, %s76
      %p85 = scmp.eq.s32.totalorder %s23, 0
      %p86 = por %p84, %p85
      %p87 = scmp.ne.s32.totalorder %s75, %s76
      %p88 = scmp.eq.s32.totalorder %s24, 1
      %p89 = por %p87, %p88
      %p91 = scmp.ne.s32.totalorder %s76, %s90
      %p92 = scmp.eq.s32.totalorder %s24, 0
      %p93 = por %p91, %p92
      %s95 = sadd.s32 %s94, 1
      %p98 = scmp.eq.s32.totalorder %s18, 1
      %p99 = scmp.ne.s32.totalorder %s94, %s96
      %p100 = scmp.eq.s32.totalorder %s18, 0
      %p101 = por %p99, %p100
      %p102 = scmp.ne.s32.totalorder %s94, %s96
      %p103 = scmp.eq.s32.totalorder %s23, 1
      %p104 = por %p102, %p103
      %p105 = scmp.ne.s32.totalorder %s96, %s97
      %p106 = scmp.eq.s32.totalorder %s23, 0
      %p107 = por %p105, %p106
      %p108 = scmp.ne.s32.totalorder %s96, %s97
      %p109 = scmp.eq.s32.totalorder %s24, 1
      %p110 = por %p108, %p109
      %p112 = scmp.ne.s32.totalorder %s97, %s111
      %p113 = scmp.eq.s32.totalorder %s24, 0
      %p114 = por %p112, %p113
      %s115 = ssub.s32 %s18, %s25
      %p116 = scmp.eq.s32.totalorder %s115, 0
      %s118 = sadd.s32 %s117, 1
      %s119 = scalar_select %p116, %s117, %s118
      %p122 = pneg %p116
      %p123 = scmp.eq.s32.totalorder %s18, 1
      %p124 = por %p122, %p123
      %p125 = scmp.ne.s32.totalorder %s117, %s120
      %p126 = scmp.eq.s32.totalorder %s18, 0
      %p127 = por %p125, %p126
      %p128 = scmp.ne.s32.totalorder %s117, %s120
      %p129 = scmp.eq.s32.totalorder %s23, 1
      %p130 = por %p128, %p129
      %p131 = scmp.ne.s32.totalorder %s120, %s121
      %p132 = scmp.eq.s32.totalorder %s23, 0
      %p133 = por %p131, %p132
      %p134 = scmp.ne.s32.totalorder %s120, %s121
      %p135 = scmp.eq.s32.totalorder %s24, 1
      %p136 = por %p134, %p135
      %p138 = scmp.ne.s32.totalorder %s121, %s137
      %p139 = scmp.eq.s32.totalorder %s24, 0
      %p140 = por %p138, %p139
      %p141 = scmp.le.s32.totalorder 1, %s18
      %p142 = scmp.lt.s32.totalorder %s18, 3
      %p143 = pnand %p141, %p142
      %p144 = pneg %p143
      // Predicated region
      $region9: #{tpu_custom_call.1} parent=5 // pred_check
        _
      $region10: #{tpu_custom_call.1} parent=5 // pred_check_branch
        %146 = sbr.rel (%p143) target = $region12
      $region11: #{tpu_custom_call.1} parent=5 // pred_region
        %s147 = ssub.s32 %s18, 1
        // Predicated region
        $region13: #{tpu_custom_call.1} parent=11 // pred_check
          %p148 = pneg %p65
        $region14: #{tpu_custom_call.1} parent=11 // pred_check_branch
          %150 = sbr.rel (%p148) target = $region16
        $region15: #{tpu_custom_call.1} parent=11 // pred_region
          _
        $region16: #{tpu_custom_call.1} parent=11 // pred_fallthru
          _
        // Predicated region
        $region17: #{tpu_custom_call.1} parent=11 // pred_check
          %p151 = pneg %p86
        $region18: #{tpu_custom_call.1} parent=11 // pred_check_branch
          %153 = sbr.rel (%p151) target = $region20
        $region19: #{tpu_custom_call.1} parent=11 // pred_region
          %s155 = ssub.s32 2048, 2048
          %156 = vsyncadd [#allocation7], %s155
          %s157 = sshll.u32 [#allocation6], 4
          %s158 = int_to_ptr.vmem [resolvable:$true] %s157
          %163 = dma.hbm_to_vmem [thread:$0]  %s2, 2048, %s158, [#allocation7], 128, 128, 8
        $region20: #{tpu_custom_call.1} parent=11 // pred_fallthru
          _
        // Predicated region
        $region21: #{tpu_custom_call.1} parent=11 // pred_check
          %p164 = pneg %p107
        $region22: #{tpu_custom_call.1} parent=11 // pred_check_branch
          %166 = sbr.rel (%p164) target = $region24
        $region23: #{tpu_custom_call.1} parent=11 // pred_region
          _
        $region24: #{tpu_custom_call.1} parent=11 // pred_fallthru
          _
      $region12: #{tpu_custom_call.1} parent=5 // pred_fallthru
        _
      %p167 = scmp.lt.s32.totalorder %s18, 2
      // Predicated region
      $region25: #{tpu_custom_call.1} parent=5 // pred_check
        %p168 = pneg %p167
      $region26: #{tpu_custom_call.1} parent=5 // pred_check_branch
        %170 = sbr.rel (%p168) target = $region28
      $region27: #{tpu_custom_call.1} parent=5 // pred_region
        // Predicated region
        $region29: #{tpu_custom_call.1} parent=27 // pred_check
          %p171 = pneg %p38
        $region30: #{tpu_custom_call.1} parent=27 // pred_check_branch
          %173 = sbr.rel (%p171) target = $region32
        $region31: #{tpu_custom_call.1} parent=27 // pred_region
          %s174 = sand.u32 %s28, 1
          %s175 = scalar_lea.sflag [#allocation4], %s174
          %s176 = sand.u32 %s28, 1
          %s177 = smul.addr %s176, 8
          %s178 = scalar_lea.vmem [#allocation3], %s177
          %s180 = ssub.s32 128, 128
          %181 = vsyncadd %s175, %s180
          %s182 = smul.addr %s18, 128
          %s183 = scalar_lea.hbm %s0, %s182
          %s185 = sshll.u32 %s178, 4
          %s186 = int_to_ptr.vmem [resolvable:$true] %s185
          %188 = dma.hbm_to_vmem [thread:$0]  %s183, 128, %s186, %s175
        $region32: #{tpu_custom_call.1} parent=27 // pred_fallthru
          _
      $region28: #{tpu_custom_call.1} parent=5 // pred_fallthru
        _
      %p189 = scmp.le.s32.totalorder 1, %s18
      %p190 = scmp.lt.s32.totalorder %s18, 3
      %p191 = pnand %p189, %p190
      %p192 = pneg %p191
      // Predicated region
      $region33: #{tpu_custom_call.1} parent=5 // pred_check
        _
      $region34: #{tpu_custom_call.1} parent=5 // pred_check_branch
        %194 = sbr.rel (%p191) target = $region36
      $region35: #{tpu_custom_call.1} parent=5 // pred_region
        %s195 = ssub.s32 %s18, 1
        %s196 = sand.u32 %s31, 1
        %s197 = scalar_lea.sflag [#allocation4], %s196
        %s198 = sand.u32 %s31, 1
        %s199 = smul.addr %s198, 8
        %s200 = scalar_lea.vmem [#allocation3], %s199
        // Predicated region
        $region37: #{tpu_custom_call.1} parent=35 // pred_check
          %p201 = pneg %p44
        $region38: #{tpu_custom_call.1} parent=35 // pred_check_branch
          %203 = sbr.rel (%p201) target = $region40
        $region39: #{tpu_custom_call.1} parent=35 // pred_region
          %204 = dma.done %s197, 128
        $region40: #{tpu_custom_call.1} parent=35 // pred_fallthru
          _
        // Predicated region
        $region41: #{tpu_custom_call.1} parent=35 // pred_check
          %p205 = pneg %p86
        $region42: #{tpu_custom_call.1} parent=35 // pred_check_branch
          %207 = sbr.rel (%p205) target = $region44
        $region43: #{tpu_custom_call.1} parent=35 // pred_region
          %208 = dma.done [#allocation7], 2048
        $region44: #{tpu_custom_call.1} parent=35 // pred_fallthru
          _
        %s209 = sand.u32 %s31, 1
        %s210 = scalar_lea.sflag [#allocation4], %s209
        %s211 = sand.u32 %s31, 1
        %s212 = smul.addr %s211, 8
        %s213 = scalar_lea.vmem [#allocation3], %s212
        %p214 = pneg %p44
        %p215 = pneg %p41
        %p216 = pneg %p65
        %p217 = pneg %p62
        %p218 = pneg %p86
        %p219 = pneg %p83
        %p220 = pneg %p107
        %p221 = pneg %p104
        %p222 = pneg %p133
        %p223 = pneg %p130
        %s224 = sand.u32 %s120, 1
        %s225 = scalar_lea.sflag [#allocation5], %s224
        %s226 = sand.u32 %s120, 1
        %s227 = smul.addr %s226, 8
        %s228 = scalar_lea.vmem [#allocation8], %s227
        %v229 = vld [vmem:[%s200] sm:$0xff]
        %v230 = vld [vmem:[%s1] sm:$0x1]
        %v232 = vlaneseq
        %v233 = vshrl.u32 %v232, 7
        %v234 = vsub.s32 0, %v233
        %v235 = vrot.slane %v230, %v234
        %v237 = vmul.f32 %v229, %v235
        %v238 = vld [vmem:[#allocation6] sm:$0xff]
        %v239 = vld [vmem:[#allocation6 + $0x8] sm:$0xff]
        %v240 = vld [vmem:[#allocation6 + $0x10] sm:$0xff]
        %v241 = vld [vmem:[#allocation6 + $0x18] sm:$0xff]
        %v242 = vld [vmem:[#allocation6 + $0x20] sm:$0xff]
        %v243 = vld [vmem:[#allocation6 + $0x28] sm:$0xff]
        %v244 = vld [vmem:[#allocation6 + $0x30] sm:$0xff]
        %v245 = vld [vmem:[#allocation6 + $0x38] sm:$0xff]
        %v246 = vld [vmem:[#allocation6 + $0x40] sm:$0xff]
        %v247 = vld [vmem:[#allocation6 + $0x48] sm:$0xff]
        %v248 = vld [vmem:[#allocation6 + $0x50] sm:$0xff]
        %v249 = vld [vmem:[#allocation6 + $0x58] sm:$0xff]
        %v250 = vld [vmem:[#allocation6 + $0x60] sm:$0xff]
        %v251 = vld [vmem:[#allocation6 + $0x68] sm:$0xff]
        %v252 = vld [vmem:[#allocation6 + $0x70] sm:$0xff]
        %v253 = vld [vmem:[#allocation6 + $0x78] sm:$0xff]
        %s254 = sld [smem:[#allocation2]]
        %v255 = vstv %s254
        %256 = vmatprep.subr.mxu0 0.0
        %257 = vmatpush1.msra.mxu0 %v238
        %258 = vmatprep.subr.mxu0 0.0
        %259 = vmatpush1.msra.mxu0 %v239
        %260 = vmatprep.subr.mxu0 0.0
        %261 = vmatpush1.msra.mxu0 %v240
        %262 = vmatprep.subr.mxu0 0.0
        %263 = vmatpush1.msra.mxu0 %v241
        %264 = vmatprep.subr.mxu0 0.0
        %265 = vmatpush1.msra.mxu0 %v242
        %266 = vmatprep.subr.mxu0 0.0
        %267 = vmatpush1.msra.mxu0 %v243
        %268 = vmatprep.subr.mxu0 0.0
        %269 = vmatpush1.msra.mxu0 %v244
        %270 = vmatprep.subr.mxu0 0.0
        %271 = vmatpush1.msra.mxu0 %v245
        %272 = vmatprep.subr.mxu0 0.0
        %273 = vmatpush1.msra.mxu0 %v246
        %274 = vmatprep.subr.mxu0 0.0
        %275 = vmatpush1.msra.mxu0 %v247
        %276 = vmatprep.subr.mxu0 0.0
        %277 = vmatpush1.msra.mxu0 %v248
        %278 = vmatprep.subr.mxu0 0.0
        %279 = vmatpush1.msra.mxu0 %v249
        %280 = vmatprep.subr.mxu0 0.0
        %281 = vmatpush1.msra.mxu0 %v250
        %282 = vmatprep.subr.mxu0 0.0
        %283 = vmatpush1.msra.mxu0 %v251
        %284 = vmatprep.subr.mxu0 0.0
        %285 = vmatpush1.msra.mxu0 %v252
        %286 = vmatprep.subr.mxu0 0.0
        %287 = vmatpush1.msra.mxu0 %v253
        %288 = vmatprep.subr.mxu0 0.0
        %289 = vmatpush1.msra.mxu0 0.0
        %290 = vmatprep.subr.mxu0 0.0
        %291 = vmatpush1.msra.mxu0 0.0
        %292 = vmatprep.subr.mxu0 0.0
        %293 = vmatpush1.msra.mxu0 0.0
        %294 = vmatprep.subr.mxu0 0.0
        %295 = vmatpush1.msra.mxu0 0.0
        %296 = vmatprep.subr.mxu0 0.0
        %297 = vmatpush1.msra.mxu0 0.0
        %298 = vmatprep.subr.mxu0 0.0
        %299 = vmatpush1.msra.mxu0 0.0
        %300 = vmatprep.subr.mxu0 0.0
        %301 = vmatpush1.msra.mxu0 0.0
        %302 = vmatprep.subr.mxu0 0.0
        %303 = vmatpush1.msra.mxu0 0.0
        %304 = vmatprep.subr.mxu0 0.0
        %305 = vmatpush1.msra.mxu0 0.0
        %306 = vmatprep.subr.mxu0 0.0
        %307 = vmatpush1.msra.mxu0 0.0
        %308 = vmatprep.subr.mxu0 0.0
        %309 = vmatpush1.msra.mxu0 0.0
        %310 = vmatprep.subr.mxu0 0.0
        %311 = vmatpush1.msra.mxu0 0.0
        %312 = vmatprep.subr.mxu0 0.0
        %313 = vmatpush1.msra.mxu0 0.0
        %314 = vmatprep.subr.mxu0 0.0
        %315 = vmatpush1.msra.mxu0 0.0
        %316 = vmatprep.subr.mxu0 0.0
        %317 = vmatpush1.msra.mxu0 0.0
        %318 = vmatprep.subr.mxu0 0.0
        %319 = vmatpush1.msra.mxu0 0.0
        %320 = vmatprep.mubr.f32.mxu0 0.0
        %321 = vmatmul.mubr.f32.gmra.mrb[0].mxu0 %v237
        %v322 = vpop.f32.mrb[0].mxu0
        %v323 = vadd.f32 %v255, %v322
        %v324 = vpop.f32.mrb[0].mxu0
        %325 = vdwg.mxu0
        %v326 = vxor.u32 %v323, 2147483648
        %v327 = vmul.f32 %v326, 1.442695
        %v328 = vpow.pop %v327
        %v329 = vadd.f32 %v328, 1.0
        %v330 = vrcp.pop %v329
        %v331 = vmul.f32 1.0, %v330
        %v332 = vmul.f32 %v229, %v331
        %333 = vst [vmem:[%s228] sm:$0xff] %v332
        %s334 = sand.u32 %s120, 1
        %s335 = scalar_lea.sflag [#allocation5], %s334
        %s336 = sand.u32 %s120, 1
        %s337 = smul.addr %s336, 8
        %s338 = scalar_lea.vmem [#allocation8], %s337
        // Predicated region
        $region45: #{tpu_custom_call.1} parent=35 // pred_check
          %p339 = pneg %p130
        $region46: #{tpu_custom_call.1} parent=35 // pred_check_branch
          %341 = sbr.rel (%p339) target = $region48
        $region47: #{tpu_custom_call.1} parent=35 // pred_region
          %s343 = ssub.s32 128, 128
          %344 = vsyncadd %s335, %s343
          %s345 = smul.addr %s23, 128
          %s346 = scalar_lea.hbm %s4, %s345
          %s348 = sshll.u32 %s338, 4
          %s349 = int_to_ptr.vmem [resolvable:$true] %s348
          %351 = dma.vmem_to_hbm [thread:$0]  %s349, 128, %s346, %s335
        $region48: #{tpu_custom_call.1} parent=35 // pred_fallthru
          _
      $region36: #{tpu_custom_call.1} parent=5 // pred_fallthru
        _
      %p352 = scmp.le.s32.totalorder 2, %s18
      // Predicated region
      $region49: #{tpu_custom_call.1} parent=5 // pred_check
        %p353 = pneg %p352
      $region50: #{tpu_custom_call.1} parent=5 // pred_check_branch
        %355 = sbr.rel (%p353) target = $region52
      $region51: #{tpu_custom_call.1} parent=5 // pred_region
        %s356 = ssub.s32 %s18, 2
        // Predicated region
        $region53: #{tpu_custom_call.1} parent=51 // pred_check
          %p357 = pneg %p136
        $region54: #{tpu_custom_call.1} parent=51 // pred_check_branch
          %359 = sbr.rel (%p357) target = $region56
        $region55: #{tpu_custom_call.1} parent=51 // pred_region
          %s360 = sand.u32 %s121, 1
          %s361 = scalar_lea.sflag [#allocation5], %s360
          %s362 = sand.u32 %s121, 1
          %s363 = smul.addr %s362, 8
          %s364 = scalar_lea.vmem [#allocation8], %s363
          %365 = dma.done %s361, 128
        $region56: #{tpu_custom_call.1} parent=51 // pred_fallthru
          _
      $region52: #{tpu_custom_call.1} parent=5 // pred_fallthru
        _
    $region6: #{tpu_custom_call.1} parent=1 // loop_footer
      %s22 = sadd.s32 1, %s18
    $region7: #{tpu_custom_call.1} parent=1 // loop_footer_branch
      %17 = sbr.rel target = $region3
    $region8: #{tpu_custom_call.1} parent=1 // loop_exit
      _
    %366 = vsyncpa [#allocation4], 1
    %s367 = scalar_lea.sflag [#allocation4], 1
    %368 = vsyncpa %s367, 1
    %369 = vsyncpa [#allocation7], 1
    %370 = vsyncpa [#allocation5], 1
    %s371 = scalar_lea.sflag [#allocation5], 1
    %372 = vsyncpa %s371, 1

</llo_original>
